<compile_context>
chip_gen: v5e
topology: v5e:2x2
jax: 0.10.0
libtpu: 0.0.40
codegen_flags: <defaults>
</compile_context>

<pallas_src>
import functools

import jax
import jax.numpy as jnp
from jax.experimental import pallas as pl
from jax.experimental.pallas import tpu as pltpu


def _round_up(x: int, m: int) -> int:
    return (x + m - 1) // m * m


def _proj_kernel(x_ref, w_ref, b_ref, o_ref):
    # x_ref: (TM, patch_dim) f32      w_ref: (patch_dim, d_model_p) f32
    # b_ref: (1, d_model_p) f32       o_ref: (TM, d_model_p) f32
    acc = jnp.dot(x_ref[...], w_ref[...], preferred_element_type=jnp.float32)
    o_ref[...] = (acc + b_ref[...]).astype(o_ref.dtype)


def patch_embed(x, w, b, patch_time, patch_freq, *, tm=2048):
    """JAX/Pallas equivalent of PatchEmbed.forward.

    x: (B, T, F) float32
    w: (patch_dim, d_model)  -- transposed vs. torch Linear.weight (d_model, patch_dim)
    b: (d_model,)
    returns: (B, nT * nF, d_model)
    """
    B, T, F = x.shape
    new_T = (T // patch_time) * patch_time
    new_F = (F // patch_freq) * patch_freq
    x = x[:, :new_T, :new_F]
    nT = new_T // patch_time
    nF = new_F // patch_freq
    patch_dim = patch_time * patch_freq

    # Patch extraction (layout plumbing) -- stays in XLA, see TODO above.
    xp = x.reshape(B, nT, patch_time, nF, patch_freq)
    xp = jnp.transpose(xp, (0, 1, 3, 2, 4))
    xp = xp.reshape(B * nT * nF, patch_dim)

    M = xp.shape[0]
    d_model = w.shape[1]

    # Lane-dense output: pad d_model up to a multiple of 128 for the kernel and
    # slice the padding off afterwards (zero-padded weight/bias columns).  When
    # d_model is already 128-aligned (512/768/1024/...) this path is free.
    d_model_p = _round_up(d_model, 128)
    if d_model_p != d_model:
        w = jnp.pad(w, ((0, 0), (0, d_model_p - d_model)))
        b = jnp.pad(b, (0, d_model_p - d_model))
    w = w.astype(jnp.float32)
    b2 = b.reshape(1, d_model_p).astype(jnp.float32)

    # ---- Tile-size selection (1-D grid over M) ----------------------------
    # Per grid step (double-buffered x and out tiles; w/b are grid-resident):
    #   2 * tm * (lane-padded patch_dim + d_model_p) * 4 B    (+ w/b, small)
    # Budget ~12 MiB so defaults fit the scoped-VMEM limits of v5e (16 MiB),
    # v6e (32 MiB) and v7x (32 MiB of 64 MiB physical) with headroom.
    budget_bytes = 12 * 1024 * 1024
    per_row_bytes = 2 * (_round_up(patch_dim, 128) + d_model_p) * 4
    tm_budget = max(8, (budget_bytes // per_row_bytes) // 8 * 8)
    tm = max(8, min(tm, tm_budget, _round_up(M, 8)))

    # v7x has 2 TensorCores: keep at least two parallel M tiles when M allows.
    if pl.cdiv(M, tm) < 2 and M >= 16:
        tm = _round_up(pl.cdiv(M, 2), 8)

    grid = (pl.cdiv(M, tm),)

    # 1-D grid traffic: x and out streamed once, w and b fetched once.
    flops = 2 * M * patch_dim * d_model_p
    bytes_accessed = 4 * (M * patch_dim + patch_dim * d_model_p
                          + d_model_p + M * d_model_p)

    out_p = pl.pallas_call(
        _proj_kernel,
        out_shape=jax.ShapeDtypeStruct((M, d_model_p), jnp.float32),
        grid_spec=pltpu.PrefetchScalarGridSpec(
            num_scalar_prefetch=0,
            grid=grid,
            in_specs=[
                pl.BlockSpec((tm, patch_dim), lambda i: (i, 0)),
                # Grid-constant index maps: weight/bias DMA'd into VMEM once.
                pl.BlockSpec((patch_dim, d_model_p), lambda i: (0, 0)),
                pl.BlockSpec((1, d_model_p), lambda i: (0, 0)),
            ],
            out_specs=pl.BlockSpec((tm, d_model_p), lambda i: (i, 0)),
        ),
        compiler_params=pltpu.CompilerParams(
            dimension_semantics=("parallel",),
        ),
        cost_estimate=pl.CostEstimate(
            flops=flops, transcendentals=0, bytes_accessed=bytes_accessed),
    )(xp, w, b2)

    out = out_p[:, :d_model] if d_model_p != d_model else out_p
    return out.reshape(B, nT * nF, d_model)


if __name__ == "__main__":
    # Small deterministic setup consistent with the module.
    B, T, F = 2, 16, 16
    patch_time, patch_freq = 4, 4
    patch_dim = patch_time * patch_freq      # 16
    d_model = 32

    key = jax.random.PRNGKey(0)
    kx, kw, kb = jax.random.split(key, 3)
    x = jax.random.normal(kx, (B, T, F), dtype=jnp.float32)
    # Deterministic "Linear" params (kaiming-ish scale), stored as (in, out).
    w = jax.random.normal(kw, (patch_dim, d_model), dtype=jnp.float32) / jnp.sqrt(patch_dim)
    b = jax.random.normal(kb, (d_model,), dtype=jnp.float32) * 0.01

    fn = jax.jit(functools.partial(patch_embed,
                                   patch_time=patch_time,
                                   patch_freq=patch_freq))
    out = jax.block_until_ready(fn(x, w, b))

    # Pure-JAX reference for sanity (matches the PyTorch forward).
    nT, nF = T // patch_time, F // patch_freq
    xr = x[:, : nT * patch_time, : nF * patch_freq]
    xr = xr.reshape(B, nT, patch_time, nF, patch_freq)
    xr = jnp.transpose(xr, (0, 1, 3, 2, 4)).reshape(B, nT * nF, patch_dim)
    ref = xr @ w + b

    assert out.shape == (B, nT * nF, d_model)
    assert jnp.allclose(out, ref, atol=1e-5, rtol=1e-5)
    print("KERNEL_OK")
</pallas_src>

<mosaic_0001>
module attributes {stable_mosaic.version = 11 : i64} {
  func.func @_proj_kernel(%arg0: i32, %arg1: memref<16x16xf32, #tpu.memory_space<vmem>>, %arg2: memref<16x128xf32, #tpu.memory_space<vmem>>, %arg3: memref<1x128xf32, #tpu.memory_space<vmem>>, %arg4: memref<16x128xf32, #tpu.memory_space<vmem>>) attributes {dimension_semantics = [#tpu.dimension_semantics<parallel>], iteration_bounds = array<i64: 2>, scalar_prefetch = 0 : i64, scratch_operands = 0 : i64, tpu.core_type = #tpu.core_type<tc>, window_params = [{transform_indices = @transform_0, window_bounds = array<i64: 16, 16>}, {pipeline_mode = #tpu.pipeline_mode<synchronous>, transform_indices = @transform_1, window_bounds = array<i64: 16, 128>}, {pipeline_mode = #tpu.pipeline_mode<synchronous>, transform_indices = @transform_2, window_bounds = array<i64: 1, 128>}, {transform_indices = @transform_3, window_bounds = array<i64: 16, 128>}]} {
    %c0 = arith.constant 0 : index
    %c0_0 = arith.constant 0 : index
    %0 = vector.load %arg1[%c0, %c0_0] : memref<16x16xf32, #tpu.memory_space<vmem>>, vector<16x16xf32>
    %c0_1 = arith.constant 0 : index
    %c0_2 = arith.constant 0 : index
    %1 = vector.load %arg2[%c0_1, %c0_2] : memref<16x128xf32, #tpu.memory_space<vmem>>, vector<16x128xf32>
    %cst = arith.constant dense<0.000000e+00> : vector<16x128xf32>
    %2 = tpu.matmul %0, %1, %cst {dimension_numbers = #tpu.dot_dimension_numbers<[1], [0], [0], [1], [0, 0, 1, 1], [], []>} : vector<16x16xf32>, vector<16x128xf32>, vector<16x128xf32> -> vector<16x128xf32>
    %c0_3 = arith.constant 0 : index
    %c0_4 = arith.constant 0 : index
    %3 = vector.load %arg3[%c0_3, %c0_4] : memref<1x128xf32, #tpu.memory_space<vmem>>, vector<1x128xf32>
    %4 = vector.broadcast %3 : vector<1x128xf32> to vector<16x128xf32>
    %5 = arith.addf %2, %4 : vector<16x128xf32>
    %c0_5 = arith.constant 0 : index
    %c0_6 = arith.constant 0 : index
    %6 = vector.load %arg4[%c0_5, %c0_6] : memref<16x128xf32, #tpu.memory_space<vmem>>, vector<16x128xf32>
    tpu.vector_store %arg4[%c0_5, %c0_6], %5 {strides = array<i32>} : memref<16x128xf32, #tpu.memory_space<vmem>>, vector<16x128xf32>,
    return
  }
  func.func @transform_0(%arg0: i32) -> (i32, i32) {
    %c0_i32 = arith.constant 0 : i32
    %c0_i32_0 = arith.constant 0 : i32
    return %arg0, %c0_i32 : i32, i32
  }
  func.func @transform_1(%arg0: i32) -> (i32, i32) {
    %c0_i32 = arith.constant 0 : i32
    %c0_i32_0 = arith.constant 0 : i32
    %c0_i32_1 = arith.constant 0 : i32
    return %c0_i32, %c0_i32_0 : i32, i32
  }
  func.func @transform_2(%arg0: i32) -> (i32, i32) {
    %c0_i32 = arith.constant 0 : i32
    %c0_i32_0 = arith.constant 0 : i32
    %c0_i32_1 = arith.constant 0 : i32
    return %c0_i32, %c0_i32_0 : i32, i32
  }
  func.func @transform_3(%arg0: i32) -> (i32, i32) {
    %c0_i32 = arith.constant 0 : i32
    %c0_i32_0 = arith.constant 0 : i32
    return %arg0, %c0_i32 : i32, i32
  }
}

</mosaic_0001>

<llo_original>
// kernel: patch_embed.1
$region0: #{patch_embed.1}
  #allocation0 [shape = 'u32[]', space=smem, size = 0x4, offset = 0x4, fixed_abs, tag = 'smem constant byte address 0x4 - core index']
  #allocation1 [shape = 'u32[72,128]{1,0:T(1,128)}', space=vmem, size = 0x9000, scoped, tag = 'internal scratch']
  %s0 = inlined_call_operand.vmem [shape: f32[32,16], index: 0, kind: input, shape index: {}]
  %s1 = inlined_call_operand.vmem [shape: f32[16,128], index: 1, kind: input, shape index: {}]
  %s2 = inlined_call_operand.vmem [shape: f32[1,128], index: 2, kind: input, shape index: {}]
  %s3 = inlined_call_operand.hbm [shape: f32[32,128], index: 3, kind: output, shape index: {}]
  %s4 = sld [smem:[#allocation0]]
  $region45: #{patch_embed.1} parent=0
    _
  %s6 = ssub.s32 1, %s4
  %s7 = scalar_select 0, %s6, %s4
  $region1: #{patch_embed.1} parent=0
    #allocation2 [shape = 'u8[16384]{0}', space=vmem, size = 0x4000, scoped, tag = 'output window, operand 0']
    #allocation3 [shape = 's32[2]{0}', space=sflag, size = 0x8, scoped, tag = 'scoped memory for patch_embed.1']
    %8 = vsyncpa [#allocation3], 0
    %s9 = scalar_lea.sflag [#allocation3], 1
    %10 = vsyncpa %s9, 0
    loop: start=0, step=1, limit=4
    $region2: #{patch_embed.1} parent=1 // loop_pre_header
      _
    $region3: #{patch_embed.1} parent=1 // loop_header
      %s12 = sphi 0, %s16
      %p13 = scmp.ge.s32.totalorder %s12, 4
      %s22 = sphi 0, %s24
      %s25 = sphi 0, %s22
      %s26 = sphi 0, %s25
      %s42 = sphi 0, %s26
      %s46 = sphi 0, %s46
      %s48 = sphi 0, %s46
      %s49 = sphi 0, %s48
      %s63 = sphi 0, %s49
      %s67 = sphi 0, %s67
      %s69 = sphi 0, %s67
      %s70 = sphi 0, %s69
      %s84 = sphi 0, %s70
      %s90 = sphi 0, %s92
      %s93 = sphi 0, %s90
      %s94 = sphi 0, %s93
      %s110 = sphi 0, %s94
    $region4: #{patch_embed.1} parent=1 // loop_header_branch
      %15 = sbr.rel (%p13) target = $region8
    $region5: #{patch_embed.1} parent=1 // loop_body
      %s17 = ssub.s32 %s12, 1
      %s18 = ssub.s32 %s12, 2
      %s19 = sadd.s32 %s12, 1
      %s20 = ssub.s32 %s12, %s19
      %p21 = scmp.eq.s32.totalorder %s20, 0
      %s23 = sadd.s32 %s22, 1
      %s24 = scalar_select %p21, %s22, %s23
      %p27 = pneg %p21
      %p28 = scmp.eq.s32.totalorder %s12, 1
      %p29 = por %p27, %p28
      %p30 = scmp.ne.s32.totalorder %s22, %s25
      %p31 = scmp.eq.s32.totalorder %s12, 0
      %p32 = por %p30, %p31
      %p33 = scmp.ne.s32.totalorder %s22, %s25
      %p34 = scmp.eq.s32.totalorder %s17, 1
      %p35 = por %p33, %p34
      %p36 = scmp.ne.s32.totalorder %s25, %s26
      %p37 = scmp.eq.s32.totalorder %s17, 0
      %p38 = por %p36, %p37
      %p39 = scmp.ne.s32.totalorder %s25, %s26
      %p40 = scmp.eq.s32.totalorder %s18, 1
      %p41 = por %p39, %p40
      %p43 = scmp.ne.s32.totalorder %s26, %s42
      %p44 = scmp.eq.s32.totalorder %s18, 0
      %p45 = por %p43, %p44
      %s47 = sadd.s32 %s46, 1
      %p50 = scmp.eq.s32.totalorder %s12, 1
      %p51 = scmp.ne.s32.totalorder %s46, %s48
      %p52 = scmp.eq.s32.totalorder %s12, 0
      %p53 = por %p51, %p52
      %p54 = scmp.ne.s32.totalorder %s46, %s48
      %p55 = scmp.eq.s32.totalorder %s17, 1
      %p56 = por %p54, %p55
      %p57 = scmp.ne.s32.totalorder %s48, %s49
      %p58 = scmp.eq.s32.totalorder %s17, 0
      %p59 = por %p57, %p58
      %p60 = scmp.ne.s32.totalorder %s48, %s49
      %p61 = scmp.eq.s32.totalorder %s18, 1
      %p62 = por %p60, %p61
      %p64 = scmp.ne.s32.totalorder %s49, %s63
      %p65 = scmp.eq.s32.totalorder %s18, 0
      %p66 = por %p64, %p65
      %s68 = sadd.s32 %s67, 1
      %p71 = scmp.eq.s32.totalorder %s12, 1
      %p72 = scmp.ne.s32.totalorder %s67, %s69
      %p73 = scmp.eq.s32.totalorder %s12, 0
      %p74 = por %p72, %p73
      %p75 = scmp.ne.s32.totalorder %s67, %s69
      %p76 = scmp.eq.s32.totalorder %s17, 1
      %p77 = por %p75, %p76
      %p78 = scmp.ne.s32.totalorder %s69, %s70
      %p79 = scmp.eq.s32.totalorder %s17, 0
      %p80 = por %p78, %p79
      %p81 = scmp.ne.s32.totalorder %s69, %s70
      %p82 = scmp.eq.s32.totalorder %s18, 1
      %p83 = por %p81, %p82
      %p85 = scmp.ne.s32.totalorder %s70, %s84
      %p86 = scmp.eq.s32.totalorder %s18, 0
      %p87 = por %p85, %p86
      %s88 = ssub.s32 %s12, %s19
      %p89 = scmp.eq.s32.totalorder %s88, 0
      %s91 = sadd.s32 %s90, 1
      %s92 = scalar_select %p89, %s90, %s91
      %p95 = pneg %p89
      %p96 = scmp.eq.s32.totalorder %s12, 1
      %p97 = por %p95, %p96
      %p98 = scmp.ne.s32.totalorder %s90, %s93
      %p99 = scmp.eq.s32.totalorder %s12, 0
      %p100 = por %p98, %p99
      %p101 = scmp.ne.s32.totalorder %s90, %s93
      %p102 = scmp.eq.s32.totalorder %s17, 1
      %p103 = por %p101, %p102
      %p104 = scmp.ne.s32.totalorder %s93, %s94
      %p105 = scmp.eq.s32.totalorder %s17, 0
      %p106 = por %p104, %p105
      %p107 = scmp.ne.s32.totalorder %s93, %s94
      %p108 = scmp.eq.s32.totalorder %s18, 1
      %p109 = por %p107, %p108
      %p111 = scmp.ne.s32.totalorder %s94, %s110
      %p112 = scmp.eq.s32.totalorder %s18, 0
      %p113 = por %p111, %p112
      %p114 = scmp.le.s32.totalorder 1, %s12
      %p115 = scmp.lt.s32.totalorder %s12, 3
      %p116 = pnand %p114, %p115
      %p117 = pneg %p116
      // Predicated region
      $region9: #{patch_embed.1} parent=5 // pred_check
        _
      $region10: #{patch_embed.1} parent=5 // pred_check_branch
        %119 = sbr.rel (%p116) target = $region12
      $region11: #{patch_embed.1} parent=5 // pred_region
        %s120 = ssub.s32 %s12, 1
        // Predicated region
        $region13: #{patch_embed.1} parent=11 // pred_check
          %p121 = pneg %p59
        $region14: #{patch_embed.1} parent=11 // pred_check_branch
          %123 = sbr.rel (%p121) target = $region16
        $region15: #{patch_embed.1} parent=11 // pred_region
          _
        $region16: #{patch_embed.1} parent=11 // pred_fallthru
          _
        // Predicated region
        $region17: #{patch_embed.1} parent=11 // pred_check
          %p124 = pneg %p80
        $region18: #{patch_embed.1} parent=11 // pred_check_branch
          %126 = sbr.rel (%p124) target = $region20
        $region19: #{patch_embed.1} parent=11 // pred_region
          _
        $region20: #{patch_embed.1} parent=11 // pred_fallthru
          _
      $region12: #{patch_embed.1} parent=5 // pred_fallthru
        _
      %p127 = scmp.lt.s32.totalorder %s12, 2
      // Predicated region
      $region21: #{patch_embed.1} parent=5 // pred_check
        %p128 = pneg %p127
      $region22: #{patch_embed.1} parent=5 // pred_check_branch
        %130 = sbr.rel (%p128) target = $region24
      $region23: #{patch_embed.1} parent=5 // pred_region
        // Predicated region
        $region25: #{patch_embed.1} parent=23 // pred_check
          %p131 = pneg %p32
        $region26: #{patch_embed.1} parent=23 // pred_check_branch
          %133 = sbr.rel (%p131) target = $region28
        $region27: #{patch_embed.1} parent=23 // pred_region
          %s134 = smul.u32 2, %s12
          %p135 = scmp.lt.s32.totalorder %s134, 3
          %s136 = scalar_select %p135, %s134, 3
          %s137 = smul.addr %s136, 8
          %s138 = scalar_lea.vmem %s0, %s137
          %s139 = smul.u32 2, %s12
        $region28: #{patch_embed.1} parent=23 // pred_fallthru
          _
      $region24: #{patch_embed.1} parent=5 // pred_fallthru
        _
      %p140 = scmp.le.s32.totalorder 1, %s12
      %p141 = scmp.lt.s32.totalorder %s12, 3
      %p142 = pnand %p140, %p141
      %p143 = pneg %p142
      // Predicated region
      $region29: #{patch_embed.1} parent=5 // pred_check
        _
      $region30: #{patch_embed.1} parent=5 // pred_check_branch
        %145 = sbr.rel (%p142) target = $region32
      $region31: #{patch_embed.1} parent=5 // pred_region
        %s146 = ssub.s32 %s12, 1
        %s147 = smul.u32 2, %s17
        %p148 = scmp.lt.s32.totalorder %s147, 3
        %s149 = scalar_select %p148, %s147, 3
        %s150 = smul.addr %s149, 8
        %s151 = scalar_lea.vmem %s0, %s150
        %p152 = pneg %p38
        %p153 = pneg %p35
        %p154 = pneg %p59
        %p155 = pneg %p56
        %p156 = pneg %p80
        %p157 = pneg %p77
        %p158 = pneg %p106
        %p159 = pneg %p103
        %s160 = sand.u32 %s93, 1
        %s161 = scalar_lea.sflag [#allocation3], %s160
        %s162 = sand.u32 %s93, 1
        %s163 = smul.addr %s162, 16
        %s164 = scalar_lea.vmem [#allocation2], %s163
        %s165 = smul.u32 2, %s17
        %p166 = scmp.lt.s32.totalorder %s165, 3
        %s167 = scalar_select %p166, %s165, 3
        %s168 = smul.addr %s167, 8
        %s169 = scalar_lea.vmem %s0, %s168
        %s170 = smul.u32 2, %s17
        %s171 = smul.u32 2, %s17
        %v172 = vld [vmem:[%s169] sm:$0xff]
        %v173 = vld [vmem:[%s169 + $0x8] sm:$0xff]
        %v174 = vld [vmem:[%s1] sm:$0xff]
        %v175 = vld [vmem:[%s1 + $0x8] sm:$0xff]
        %v176 = vld [vmem:[%s2] sm:$0x1]
        %v178 = vperm.slane %v176, 0
        %vm180 = vcmask 130048
        %v182 = vsel %vm180, %v172, 0
        %v185 = vsel %vm180, %v173, 0
        %187 = vmatpush.msra.mxu0 0.0
        %188 = vmatpush.msra.mxu0 0.0
        %189 = vmatpush.msra.mxu0 0.0
        %190 = vmatpush.msra.mxu0 0.0
        %191 = vmatpush.msra.mxu0 0.0
        %192 = vmatpush.msra.mxu0 0.0
        %193 = vmatpush.msra.mxu0 0.0
        %194 = vmatpush.msra.mxu0 0.0
        %195 = vmatpush.msra.mxu0 0.0
        %196 = vmatpush.msra.mxu0 0.0
        %197 = vmatpush.msra.mxu0 0.0
        %198 = vmatpush.msra.mxu0 0.0
        %199 = vmatpush.msra.mxu0 0.0
        %200 = vmatpush.msra.mxu0 0.0
        %201 = vmatpush.msra.mxu0 %v175
        %202 = vmatpush.msra.mxu0 %v174
        %203 = vmatmul.f32.gmra.mxu0 %v182
        %v204 = vpop.f32.mrf.mxu0
        %v205 = vadd.f32 %v178, %v204
        %206 = vmatmul.f32.gmra.mxu0 %v185
        %v207 = vpop.f32.mrf.mxu0
        %v208 = vadd.f32 %v178, %v207
        %209 = vdwg.mxu0
        %210 = vst [vmem:[%s164] sm:$0xff] %v205
        %211 = vst [vmem:[%s164 + $0x8] sm:$0xff] %v208
        %s212 = sand.u32 %s93, 1
        %s213 = scalar_lea.sflag [#allocation3], %s212
        %s214 = sand.u32 %s93, 1
        %s215 = smul.addr %s214, 16
        %s216 = scalar_lea.vmem [#allocation2], %s215
        // Predicated region
        $region33: #{patch_embed.1} parent=31 // pred_check
          %p217 = pneg %p103
        $region34: #{patch_embed.1} parent=31 // pred_check_branch
          %219 = sbr.rel (%p217) target = $region36
        $region35: #{patch_embed.1} parent=31 // pred_region
          %s220 = smul.u32 2, %s17
          %222 = vsyncadd %s213, 0
          %s223 = smul.addr %s220, 8
          %s224 = scalar_lea.hbm %s3, %s223
          %s225 = sshll.u32 %s216, 4
          %s226 = int_to_ptr.vmem [resolvable:$true] %s225
          %s227 = sshll.u32 %s224, 4
          %s228 = int_to_ptr.hbm [resolvable:$true] %s227
          %233 = dma.vmem_to_hbm [thread:$0]  %s226, 256, %s228, %s213, 128, 128, 8
        $region36: #{patch_embed.1} parent=31 // pred_fallthru
          _
      $region32: #{patch_embed.1} parent=5 // pred_fallthru
        _
      %p234 = scmp.le.s32.totalorder 2, %s12
      // Predicated region
      $region37: #{patch_embed.1} parent=5 // pred_check
        %p235 = pneg %p234
      $region38: #{patch_embed.1} parent=5 // pred_check_branch
        %237 = sbr.rel (%p235) target = $region40
      $region39: #{patch_embed.1} parent=5 // pred_region
        %s238 = ssub.s32 %s12, 2
        // Predicated region
        $region41: #{patch_embed.1} parent=39 // pred_check
          %p239 = pneg %p109
        $region42: #{patch_embed.1} parent=39 // pred_check_branch
          %241 = sbr.rel (%p239) target = $region44
        $region43: #{patch_embed.1} parent=39 // pred_region
          %s242 = sand.u32 %s94, 1
          %s243 = scalar_lea.sflag [#allocation3], %s242
          %s244 = sand.u32 %s94, 1
          %s245 = smul.addr %s244, 16
          %s246 = scalar_lea.vmem [#allocation2], %s245
          %248 = dma.done %s243, 256
        $region44: #{patch_embed.1} parent=39 // pred_fallthru
          _
      $region40: #{patch_embed.1} parent=5 // pred_fallthru
        _
    $region6: #{patch_embed.1} parent=1 // loop_footer
      %s16 = sadd.s32 1, %s12
    $region7: #{patch_embed.1} parent=1 // loop_footer_branch
      %11 = sbr.rel target = $region3
    $region8: #{patch_embed.1} parent=1 // loop_exit
      _
    %249 = vsyncpa [#allocation3], 1
    %s250 = scalar_lea.sflag [#allocation3], 1
    %251 = vsyncpa %s250, 1

</llo_original>
